<compile_context>
chip_gen: v5e
topology: v5e:2x2
jax: 0.10.0
libtpu: 0.0.40
codegen_flags: <defaults>
</compile_context>

<pallas_src>
import functools

import jax
import jax.numpy as jnp
from jax.experimental import pallas as pl
from jax.experimental.pallas import tpu as pltpu


D_IN = 1024  # fixed by the module: nn.Linear(1024, vocab_size)


def _ctc_head_kernel(x_ref, w_ref, b_ref, o_ref):
    """out_tile = bf16(x_tile(tm,K)) @ w_tile(K,tn) + bias(1,tn); f32 accumulate."""
    x = x_ref[...].astype(jnp.bfloat16)  # cast in-kernel on the VPU (x stays f32 in HBM)
    acc = jnp.dot(x, w_ref[...], preferred_element_type=jnp.float32)
    o_ref[...] = (acc + b_ref[...]).astype(o_ref.dtype)


@functools.partial(jax.jit, static_argnames=("tm", "tn"))
def ctc_linear(x2d, w, b, *, tm, tn):
    """x2d: (M, K) f32, w: (K, V_pad) bf16 with V_pad % tn == 0, b: (1, V_pad) f32.

    Returns (M, V_pad) f32 logits.  M need not be a multiple of tm: Pallas masks
    the trailing partial row block on writeback (garbage tail rows never land).
    """
    M, K = x2d.shape
    _, V = w.shape
    assert K == D_IN and V % tn == 0
    grid_i = pl.cdiv(M, tm)
    grid = (grid_i, V // tn)

    cost = pl.CostEstimate(
        flops=2 * M * K * V,
        transcendentals=0,
        bytes_accessed=(
            M * K * 4              # f32 activations, read once
            + grid_i * K * V * 2   # bf16 weights, re-streamed once per row tile
            + V * 4                # bias
            + M * V * 4            # f32 output
        ),
    )

    # Double-buffered VMEM footprint of this tile plan + headroom.  Re-derived
    # per call so the same code fits v5e's 16 MiB default scoped limit and
    # stays under v7x's 64 MiB physical VMEM.
    vmem_bytes = (
        2 * tm * K * 4      # x tiles (f32)
        + 2 * K * tn * 2    # w tiles (bf16)
        + 2 * tm * tn * 4   # out tiles (f32)
        + 2 * tn * 4        # bias tiles
    )
    vmem_limit = int(min(max(vmem_bytes + (8 << 20), 16 << 20), 48 << 20))

    return pl.pallas_call(
        _ctc_head_kernel,
        out_shape=jax.ShapeDtypeStruct((M, V), jnp.float32),
        grid_spec=pltpu.PrefetchScalarGridSpec(
            num_scalar_prefetch=0,
            grid=grid,
            in_specs=[
                pl.BlockSpec((tm, K), lambda i, j: (i, 0)),   # activations, K whole
                pl.BlockSpec((K, tn), lambda i, j: (0, j)),   # weight column tile
                pl.BlockSpec((1, tn), lambda i, j: (0, j)),   # bias tile (f32)
            ],
            out_specs=pl.BlockSpec((tm, tn), lambda i, j: (i, j)),
        ),
        compiler_params=pltpu.CompilerParams(
            dimension_semantics=("parallel", "parallel"),
            vmem_limit_bytes=vmem_limit,
        ),
        cost_estimate=cost,
    )(x2d, w, b)


def _round_up(n, m):
    return ((n + m - 1) // m) * m


def _pick_tm(M):
    """Biggest MXU-aligned row tile that still leaves >= 2 i-blocks (so v7x's
    two TensorCores both get work); single full-M block for tiny inputs."""
    for tm in (1024, 512, 256, 128, 64, 32, 16, 8):
        if M >= 2 * tm:
            return tm
    return M  # single block equal to the full row extent


def _pick_tn(v_pad):
    """Collapse the j axis for small CTC vocabularies (weight stays VMEM
    resident); otherwise use >=256 to fill the v6e/v7x 256-wide MXU."""
    if v_pad <= 512:
        return v_pad
    for tn in (512, 256, 128):
        if v_pad % tn == 0:
            return tn
    return 128


class CTCWav2vec2Pallas:
    """Pallas re-implementation of CTCWav2vec2.forward:
    forward(src) = (None, Linear(1024 -> vocab)(src), None, None)
    """

    def __init__(self, vocab_size: int, key):
        self.vocab_size = vocab_size
        self.vocab_pad = _round_up(vocab_size, 128)
        k_w, k_b = jax.random.split(key)
        # Deterministic init mimicking nn.Linear's U(-1/sqrt(fan_in), 1/sqrt(fan_in)).
        bound = 1.0 / (D_IN ** 0.5)
        w = jax.random.uniform(k_w, (D_IN, vocab_size), jnp.float32, -bound, bound)
        b = jax.random.uniform(k_b, (1, vocab_size), jnp.float32, -bound, bound)
        if self.vocab_pad != vocab_size:  # pad columns only when needed (lane-dense output)
            pad_v = self.vocab_pad - vocab_size
            w = jnp.pad(w, ((0, 0), (0, pad_v)))
            b = jnp.pad(b, ((0, 0), (0, pad_v)))
        # Weight stored (D_IN, V_pad) in bf16 (MXU-native, halves weight HBM
        # traffic); bias stays f32 for the f32 epilogue.
        self.weight = w.astype(jnp.bfloat16)
        self.bias = b

    def forward(self, src):
        B, T, D = src.shape
        assert D == D_IN
        M = B * T
        tm = _pick_tm(M)
        tn = _pick_tn(self.vocab_pad)

        x2d = src.reshape(M, D)  # no dtype cast, no row padding in the wrapper
        out2d = ctc_linear(x2d, self.weight, self.bias, tm=tm, tn=tn)
        if self.vocab_pad != self.vocab_size:
            out2d = out2d[:, : self.vocab_size]
        ctc_outputs = out2d.reshape(B, T, self.vocab_size)

        outputs, attn_dec_dec, attn_dec_enc = (None, None, None)
        return (outputs, ctc_outputs, attn_dec_dec, attn_dec_enc)

    # TODO(synk): decode()/beam-search/spec_aug are host-side Python control flow
    # (data-dependent loops, random masking) and are not part of forward(); not
    # implemented as Pallas kernels.


def _reference(src, weight_bf16, bias_f32, vocab_size):
    """Plain-JAX reference with the same bf16-input / f32-accumulate math."""
    B, T, D = src.shape
    x_bf = src.reshape(B * T, D).astype(jnp.bfloat16)
    out = jnp.dot(x_bf, weight_bf16, preferred_element_type=jnp.float32) + bias_f32
    return out[:, :vocab_size].reshape(B, T, vocab_size)


if __name__ == "__main__":
    key = jax.random.PRNGKey(0)
    k_params, k_src, k_params2, k_src2 = jax.random.split(key, 4)

    # Case 1: aligned shapes (vocab multiple of 128; M gives 2 row blocks).
    B, T, VOCAB = 2, 8, 128
    model = CTCWav2vec2Pallas(vocab_size=VOCAB, key=k_params)
    src = jax.random.normal(k_src, (B, T, D_IN), jnp.float32)

    outputs, ctc_outputs, attn_dec_dec, attn_dec_enc = model.forward(src)
    ctc_outputs = jax.block_until_ready(ctc_outputs)

    ref = _reference(src, model.weight, model.bias, VOCAB)
    assert outputs is None and attn_dec_dec is None and attn_dec_enc is None
    assert ctc_outputs.shape == (B, T, VOCAB)
    assert jnp.allclose(ctc_outputs, ref, atol=1e-3, rtol=1e-3)

    # Case 2: ragged shapes (vocab not a multiple of 128, M not a multiple of 8)
    # to exercise masked writeback of the partial trailing block + column slice.
    B2, T2, VOCAB2 = 2, 5, 77
    model2 = CTCWav2vec2Pallas(vocab_size=VOCAB2, key=k_params2)
    src2 = jax.random.normal(k_src2, (B2, T2, D_IN), jnp.float32)

    _, ctc2, _, _ = model2.forward(src2)
    ctc2 = jax.block_until_ready(ctc2)

    ref2 = _reference(src2, model2.weight, model2.bias, VOCAB2)
    assert ctc2.shape == (B2, T2, VOCAB2)
    assert jnp.allclose(ctc2, ref2, atol=1e-3, rtol=1e-3)

    print("KERNEL_OK")
</pallas_src>

<mosaic_0001>
module attributes {stable_mosaic.version = 11 : i64} {
  func.func @_ctc_head_kernel(%arg0: i32, %arg1: i32, %arg2: memref<8x1024xf32, #tpu.memory_space<vmem>>, %arg3: memref<1024x128xbf16, #tpu.memory_space<vmem>>, %arg4: memref<1x128xf32, #tpu.memory_space<vmem>>, %arg5: memref<8x128xf32, #tpu.memory_space<vmem>>) attributes {dimension_semantics = [#tpu.dimension_semantics<parallel>, #tpu.dimension_semantics<parallel>], iteration_bounds = array<i64: 2, 1>, scalar_prefetch = 0 : i64, scratch_operands = 0 : i64, tpu.core_type = #tpu.core_type<tc>, window_params = [{transform_indices = @transform_0, window_bounds = array<i64: 8, 1024>}, {transform_indices = @transform_1, window_bounds = array<i64: 1024, 128>}, {transform_indices = @transform_2, window_bounds = array<i64: 1, 128>}, {transform_indices = @transform_3, window_bounds = array<i64: 8, 128>}]} {
    %c0 = arith.constant 0 : index
    %c0_0 = arith.constant 0 : index
    %0 = vector.load %arg2[%c0, %c0_0] : memref<8x1024xf32, #tpu.memory_space<vmem>>, vector<8x1024xf32>
    %1 = arith.truncf %0 : vector<8x1024xf32> to vector<8x1024xbf16>
    %c0_1 = arith.constant 0 : index
    %c0_2 = arith.constant 0 : index
    %2 = vector.load %arg3[%c0_1, %c0_2] : memref<1024x128xbf16, #tpu.memory_space<vmem>>, vector<1024x128xbf16>
    %cst = arith.constant dense<0.000000e+00> : vector<8x128xf32>
    %3 = tpu.matmul %1, %2, %cst {dimension_numbers = #tpu.dot_dimension_numbers<[1], [0], [0], [1], [0, 0, 1, 1], [], []>} : vector<8x1024xbf16>, vector<1024x128xbf16>, vector<8x128xf32> -> vector<8x128xf32>
    %c0_3 = arith.constant 0 : index
    %c0_4 = arith.constant 0 : index
    %4 = vector.load %arg4[%c0_3, %c0_4] : memref<1x128xf32, #tpu.memory_space<vmem>>, vector<1x128xf32>
    %5 = vector.broadcast %4 : vector<1x128xf32> to vector<8x128xf32>
    %6 = arith.addf %3, %5 : vector<8x128xf32>
    %c0_5 = arith.constant 0 : index
    %c0_6 = arith.constant 0 : index
    %7 = vector.load %arg5[%c0_5, %c0_6] : memref<8x128xf32, #tpu.memory_space<vmem>>, vector<8x128xf32>
    tpu.vector_store %arg5[%c0_5, %c0_6], %6 {strides = array<i32>} : memref<8x128xf32, #tpu.memory_space<vmem>>, vector<8x128xf32>,
    return
  }
  func.func @transform_0(%arg0: i32, %arg1: i32) -> (i32, i32) {
    %c0_i32 = arith.constant 0 : i32
    %c0_i32_0 = arith.constant 0 : i32
    return %arg0, %c0_i32 : i32, i32
  }
  func.func @transform_1(%arg0: i32, %arg1: i32) -> (i32, i32) {
    %c0_i32 = arith.constant 0 : i32
    %c0_i32_0 = arith.constant 0 : i32
    return %c0_i32, %arg1 : i32, i32
  }
  func.func @transform_2(%arg0: i32, %arg1: i32) -> (i32, i32) {
    %c0_i32 = arith.constant 0 : i32
    %c0_i32_0 = arith.constant 0 : i32
    return %c0_i32, %arg1 : i32, i32
  }
  func.func @transform_3(%arg0: i32, %arg1: i32) -> (i32, i32) {
    %c0_i32 = arith.constant 0 : i32
    return %arg0, %arg1 : i32, i32
  }
}

</mosaic_0001>

<llo_original>
// kernel: ctc_linear.1
$region0: #{ctc_linear.1}
  #allocation0 [shape = 'u32[]', space=smem, size = 0x4, offset = 0x4, fixed_abs, tag = 'smem constant byte address 0x4 - core index']
  #allocation1 [shape = 'u32[72,128]{1,0:T(1,128)}', space=vmem, size = 0x9000, scoped, tag = 'internal scratch']
  %s0 = inlined_call_operand.hbm [shape: f32[16,1024], index: 0, kind: input, shape index: {}]
  %s1 = inlined_call_operand.hbm [shape: bf16[1024,128], index: 1, kind: input, shape index: {}]
  %s2 = inlined_call_operand.vmem [shape: f32[1,128], index: 2, kind: input, shape index: {}]
  %s3 = inlined_call_operand.hbm [shape: f32[16,128], index: 3, kind: output, shape index: {}]
  %s4 = sld [smem:[#allocation0]]
  $region53: #{ctc_linear.1} parent=0
    _
  %s6 = ssub.s32 1, %s4
  %s7 = scalar_select 0, %s6, %s4
  $region1: #{ctc_linear.1} parent=0
    #allocation2 [shape = 'u8[65536]{0}', space=vmem, size = 0x10000, scoped, tag = 'input window, operand 0']
    #allocation3 [shape = 's32[2]{0}', space=sflag, size = 0x8, scoped, tag = 'scoped memory for ctc_linear.1']
    #allocation4 [shape = 's32[2]{0}', space=sflag, size = 0x8, scoped, tag = 'scoped memory for ctc_linear.1']
    #allocation5 [shape = 'u8[262144]{0}', space=vmem, size = 0x40000, scoped, tag = 'input window, operand 1, single buffered']
    #allocation6 [shape = 's32[1]{0}', space=sflag, size = 0x4, scoped, tag = 'scoped memory for ctc_linear.1']
    #allocation7 [shape = 'u8[8192]{0}', space=vmem, size = 0x2000, scoped, tag = 'output window, operand 0']
    %8 = vsyncpa [#allocation3], 0
    %s9 = scalar_lea.sflag [#allocation3], 1
    %10 = vsyncpa %s9, 0
    %11 = vsyncpa [#allocation6], 0
    %12 = vsyncpa [#allocation4], 0
    %s13 = scalar_lea.sflag [#allocation4], 1
    %14 = vsyncpa %s13, 0
    loop: start=0, step=1, limit=4
    $region2: #{ctc_linear.1} parent=1 // loop_pre_header
      _
    $region3: #{ctc_linear.1} parent=1 // loop_header
      %s16 = sphi 0, %s20
      %p17 = scmp.ge.s32.totalorder %s16, 4
      %s23 = sphi 0, %s35
      %s24 = sphi 0, %s31
      %s25 = sphi 0, %s23
      %s26 = sphi 0, %s24
      %s27 = sphi 0, %s25
      %s28 = sphi 0, %s26
      %s38 = sphi 0, %s40
      %s41 = sphi 0, %s38
      %s42 = sphi 0, %s41
      %s58 = sphi 0, %s42
      %s64 = sphi 0, %s66
      %s67 = sphi 0, %s64
      %s68 = sphi 0, %s67
      %s84 = sphi 0, %s68
      %s90 = sphi 0, %s92
      %s93 = sphi 0, %s90
      %s94 = sphi 0, %s93
      %s110 = sphi 0, %s94
      %s118 = sphi 0, %s120
      %s121 = sphi 0, %s118
      %s122 = sphi 0, %s121
      %s138 = sphi 0, %s122
    $region4: #{ctc_linear.1} parent=1 // loop_header_branch
      %19 = sbr.rel (%p17) target = $region8
    $region5: #{ctc_linear.1} parent=1 // loop_body
      %s21 = ssub.s32 %s16, 1
      %s22 = ssub.s32 %s16, 2
      %s29 = sadd.s32 1, %s24
      %p30 = scmp.ge.s32.totalorder %s29, 1
      %s31 = scalar_select %p30, 0, %s29
      %s32 = sadd.s32 1, %s23
      %s33 = scalar_select %p30, %s32, %s23
      %p34 = scmp.ge.s32.totalorder %s33, 2
      %s35 = scalar_select %p34, 0, %s33
      %s36 = ssub.s32 %s23, %s35
      %p37 = scmp.eq.s32.totalorder %s36, 0
      %s39 = sadd.s32 %s38, 1
      %s40 = scalar_select %p37, %s38, %s39
      %p43 = pneg %p37
      %p44 = scmp.eq.s32.totalorder %s16, 1
      %p45 = por %p43, %p44
      %p46 = scmp.ne.s32.totalorder %s38, %s41
      %p47 = scmp.eq.s32.totalorder %s16, 0
      %p48 = por %p46, %p47
      %p49 = scmp.ne.s32.totalorder %s38, %s41
      %p50 = scmp.eq.s32.totalorder %s21, 1
      %p51 = por %p49, %p50
      %p52 = scmp.ne.s32.totalorder %s41, %s42
      %p53 = scmp.eq.s32.totalorder %s21, 0
      %p54 = por %p52, %p53
      %p55 = scmp.ne.s32.totalorder %s41, %s42
      %p56 = scmp.eq.s32.totalorder %s22, 1
      %p57 = por %p55, %p56
      %p59 = scmp.ne.s32.totalorder %s42, %s58
      %p60 = scmp.eq.s32.totalorder %s22, 0
      %p61 = por %p59, %p60
      %s62 = ssub.s32 %s24, %s31
      %p63 = scmp.eq.s32.totalorder %s62, 0
      %s65 = sadd.s32 %s64, 1
      %s66 = scalar_select %p63, %s64, %s65
      %p69 = pneg %p63
      %p70 = scmp.eq.s32.totalorder %s16, 1
      %p71 = por %p69, %p70
      %p72 = scmp.ne.s32.totalorder %s64, %s67
      %p73 = scmp.eq.s32.totalorder %s16, 0
      %p74 = por %p72, %p73
      %p75 = scmp.ne.s32.totalorder %s64, %s67
      %p76 = scmp.eq.s32.totalorder %s21, 1
      %p77 = por %p75, %p76
      %p78 = scmp.ne.s32.totalorder %s67, %s68
      %p79 = scmp.eq.s32.totalorder %s21, 0
      %p80 = por %p78, %p79
      %p81 = scmp.ne.s32.totalorder %s67, %s68
      %p82 = scmp.eq.s32.totalorder %s22, 1
      %p83 = por %p81, %p82
      %p85 = scmp.ne.s32.totalorder %s68, %s84
      %p86 = scmp.eq.s32.totalorder %s22, 0
      %p87 = por %p85, %p86
      %s88 = ssub.s32 %s24, %s31
      %p89 = scmp.eq.s32.totalorder %s88, 0
      %s91 = sadd.s32 %s90, 1
      %s92 = scalar_select %p89, %s90, %s91
      %p95 = pneg %p89
      %p96 = scmp.eq.s32.totalorder %s16, 1
      %p97 = por %p95, %p96
      %p98 = scmp.ne.s32.totalorder %s90, %s93
      %p99 = scmp.eq.s32.totalorder %s16, 0
      %p100 = por %p98, %p99
      %p101 = scmp.ne.s32.totalorder %s90, %s93
      %p102 = scmp.eq.s32.totalorder %s21, 1
      %p103 = por %p101, %p102
      %p104 = scmp.ne.s32.totalorder %s93, %s94
      %p105 = scmp.eq.s32.totalorder %s21, 0
      %p106 = por %p104, %p105
      %p107 = scmp.ne.s32.totalorder %s93, %s94
      %p108 = scmp.eq.s32.totalorder %s22, 1
      %p109 = por %p107, %p108
      %p111 = scmp.ne.s32.totalorder %s94, %s110
      %p112 = scmp.eq.s32.totalorder %s22, 0
      %p113 = por %p111, %p112
      %s114 = ssub.s32 %s23, %s35
      %s115 = ssub.s32 %s24, %s31
      %s116 = sor.u32 %s114, %s115
      %p117 = scmp.eq.s32.totalorder %s116, 0
      %s119 = sadd.s32 %s118, 1
      %s120 = scalar_select %p117, %s118, %s119
      %p123 = pneg %p117
      %p124 = scmp.eq.s32.totalorder %s16, 1
      %p125 = por %p123, %p124
      %p126 = scmp.ne.s32.totalorder %s118, %s121
      %p127 = scmp.eq.s32.totalorder %s16, 0
      %p128 = por %p126, %p127
      %p129 = scmp.ne.s32.totalorder %s118, %s121
      %p130 = scmp.eq.s32.totalorder %s21, 1
      %p131 = por %p129, %p130
      %p132 = scmp.ne.s32.totalorder %s121, %s122
      %p133 = scmp.eq.s32.totalorder %s21, 0
      %p134 = por %p132, %p133
      %p135 = scmp.ne.s32.totalorder %s121, %s122
      %p136 = scmp.eq.s32.totalorder %s22, 1
      %p137 = por %p135, %p136
      %p139 = scmp.ne.s32.totalorder %s122, %s138
      %p140 = scmp.eq.s32.totalorder %s22, 0
      %p141 = por %p139, %p140
      %p142 = scmp.le.s32.totalorder 1, %s16
      %p143 = scmp.lt.s32.totalorder %s16, 3
      %p144 = pnand %p142, %p143
      %p145 = pneg %p144
      // Predicated region
      $region9: #{ctc_linear.1} parent=5 // pred_check
        _
      $region10: #{ctc_linear.1} parent=5 // pred_check_branch
        %147 = sbr.rel (%p144) target = $region12
      $region11: #{ctc_linear.1} parent=5 // pred_region
        %s148 = ssub.s32 %s16, 1
        // Predicated region
        $region13: #{ctc_linear.1} parent=11 // pred_check
          %p149 = pneg %p80
        $region14: #{ctc_linear.1} parent=11 // pred_check_branch
          %151 = sbr.rel (%p149) target = $region16
        $region15: #{ctc_linear.1} parent=11 // pred_region
          %153 = vsyncadd [#allocation6], 0
          %s154 = smul.addr %s26, 4
          %s155 = scalar_lea.hbm %s1, %s154
          %s156 = sshll.u32 %s155, 4
          %s157 = int_to_ptr.hbm [resolvable:$true] %s156
          %s158 = sshll.u32 [#allocation5], 4
          %s159 = int_to_ptr.vmem [resolvable:$true] %s158
          %164 = dma.hbm_to_vmem [thread:$0]  %s157, 8192, %s159, [#allocation6], 64, 64, 4
        $region16: #{ctc_linear.1} parent=11 // pred_fallthru
          _
        // Predicated region
        $region17: #{ctc_linear.1} parent=11 // pred_check
          %p165 = pneg %p106
        $region18: #{ctc_linear.1} parent=11 // pred_check_branch
          %167 = sbr.rel (%p165) target = $region20
        $region19: #{ctc_linear.1} parent=11 // pred_region
          %p168 = scmp.lt.s32.totalorder %s26, 0
          %s169 = scalar_select %p168, %s26, 0
          %s170 = scalar_lea.vmem %s2, %s169
        $region20: #{ctc_linear.1} parent=11 // pred_fallthru
          _
      $region12: #{ctc_linear.1} parent=5 // pred_fallthru
        _
      %p171 = scmp.lt.s32.totalorder %s16, 2
      // Predicated region
      $region21: #{ctc_linear.1} parent=5 // pred_check
        %p172 = pneg %p171
      $region22: #{ctc_linear.1} parent=5 // pred_check_branch
        %174 = sbr.rel (%p172) target = $region24
      $region23: #{ctc_linear.1} parent=5 // pred_region
        // Predicated region
        $region25: #{ctc_linear.1} parent=23 // pred_check
          %p175 = pneg %p48
        $region26: #{ctc_linear.1} parent=23 // pred_check_branch
          %177 = sbr.rel (%p175) target = $region28
        $region27: #{ctc_linear.1} parent=23 // pred_region
          %s178 = sand.u32 %s38, 1
          %s179 = scalar_lea.sflag [#allocation3], %s178
          %s180 = sand.u32 %s38, 1
          %s181 = smul.addr %s180, 64
          %s182 = scalar_lea.vmem [#allocation2], %s181
          %184 = vsyncadd %s179, 0
          %s185 = smul.addr %s23, 8
          %s186 = smul.addr %s185, 8
          %s187 = scalar_lea.hbm %s0, %s186
          %s189 = sshll.u32 %s187, 4
          %s190 = int_to_ptr.hbm [resolvable:$true] %s189
          %s191 = sshll.u32 %s182, 4
          %s192 = int_to_ptr.vmem [resolvable:$true] %s191
          %194 = dma.hbm_to_vmem [thread:$0]  %s190, 1024, %s192, %s179
        $region28: #{ctc_linear.1} parent=23 // pred_fallthru
          _
      $region24: #{ctc_linear.1} parent=5 // pred_fallthru
        _
      %p195 = scmp.le.s32.totalorder 1, %s16
      %p196 = scmp.lt.s32.totalorder %s16, 3
      %p197 = pnand %p195, %p196
      %p198 = pneg %p197
      // Predicated region
      $region29: #{ctc_linear.1} parent=5 // pred_check
        _
      $region30: #{ctc_linear.1} parent=5 // pred_check_branch
        %200 = sbr.rel (%p197) target = $region32
      $region31: #{ctc_linear.1} parent=5 // pred_region
        %s201 = ssub.s32 %s16, 1
        %s202 = sand.u32 %s41, 1
        %s203 = scalar_lea.sflag [#allocation3], %s202
        %s204 = sand.u32 %s41, 1
        %s205 = smul.addr %s204, 64
        %s206 = scalar_lea.vmem [#allocation2], %s205
        // Predicated region
        $region33: #{ctc_linear.1} parent=31 // pred_check
          %p207 = pneg %p54
        $region34: #{ctc_linear.1} parent=31 // pred_check_branch
          %209 = sbr.rel (%p207) target = $region36
        $region35: #{ctc_linear.1} parent=31 // pred_region
          %211 = dma.done %s203, 1024
        $region36: #{ctc_linear.1} parent=31 // pred_fallthru
          _
        // Predicated region
        $region37: #{ctc_linear.1} parent=31 // pred_check
          %p212 = pneg %p80
        $region38: #{ctc_linear.1} parent=31 // pred_check_branch
          %214 = sbr.rel (%p212) target = $region40
        $region39: #{ctc_linear.1} parent=31 // pred_region
          %216 = dma.done [#allocation6], 8192
        $region40: #{ctc_linear.1} parent=31 // pred_fallthru
          _
        %s217 = sand.u32 %s41, 1
        %s218 = scalar_lea.sflag [#allocation3], %s217
        %s219 = sand.u32 %s41, 1
        %s220 = smul.addr %s219, 64
        %s221 = scalar_lea.vmem [#allocation2], %s220
        %p222 = pneg %p54
        %p223 = pneg %p51
        %p224 = pneg %p80
        %p225 = pneg %p77
        %p226 = scmp.lt.s32.totalorder %s26, 0
        %s227 = scalar_select %p226, %s26, 0
        %s228 = scalar_lea.vmem %s2, %s227
        %p229 = pneg %p106
        %p230 = pneg %p103
        %p231 = pneg %p134
        %p232 = pneg %p131
        %s233 = sand.u32 %s121, 1
        %s234 = scalar_lea.sflag [#allocation4], %s233
        %s235 = sand.u32 %s121, 1
        %s236 = smul.addr %s235, 8
        %s237 = scalar_lea.vmem [#allocation7], %s236
        %p238 = scmp.lt.s32.totalorder %s26, 0
        %s239 = scalar_select %p238, %s26, 0
        %s240 = scalar_lea.vmem %s2, %s239
        %v241 = vld [vmem:[%s206] sm:$0xff]
        %v242 = vld [vmem:[%s206 + $0x8] sm:$0xff]
        %v243 = vld [vmem:[%s206 + $0x10] sm:$0xff]
        %v244 = vld [vmem:[%s206 + $0x18] sm:$0xff]
        %v245 = vld [vmem:[%s206 + $0x20] sm:$0xff]
        %v246 = vld [vmem:[%s206 + $0x28] sm:$0xff]
        %v247 = vld [vmem:[%s206 + $0x30] sm:$0xff]
        %v248 = vld [vmem:[%s206 + $0x38] sm:$0xff]
        %v249 = vpack.c.bf16 %v241, %v241
        %v250 = vpack.c.bf16 %v242, %v242
        %v251 = vpack.c.bf16 %v243, %v243
        %v252 = vpack.c.bf16 %v244, %v244
        %v253 = vpack.c.bf16 %v245, %v245
        %v254 = vpack.c.bf16 %v246, %v246
        %v255 = vpack.c.bf16 %v247, %v247
        %v256 = vpack.c.bf16 %v248, %v248
        %v257 = vld [vmem:[#allocation5] sm:$0xf]
        %v258 = vld [vmem:[#allocation5 + $0x4] sm:$0xf]
        %v259 = vld [vmem:[#allocation5 + $0x8] sm:$0xf]
        %v260 = vld [vmem:[#allocation5 + $0xc] sm:$0xf]
        %v261 = vld [vmem:[#allocation5 + $0x10] sm:$0xf]
        %v262 = vld [vmem:[#allocation5 + $0x14] sm:$0xf]
        %v263 = vld [vmem:[#allocation5 + $0x18] sm:$0xf]
        %v264 = vld [vmem:[#allocation5 + $0x1c] sm:$0xf]
        %v265 = vld [vmem:[#allocation5 + $0x20] sm:$0xf]
        %v266 = vld [vmem:[#allocation5 + $0x24] sm:$0xf]
        %v267 = vld [vmem:[#allocation5 + $0x28] sm:$0xf]
        %v268 = vld [vmem:[#allocation5 + $0x2c] sm:$0xf]
        %v269 = vld [vmem:[#allocation5 + $0x30] sm:$0xf]
        %v270 = vld [vmem:[#allocation5 + $0x34] sm:$0xf]
        %v271 = vld [vmem:[#allocation5 + $0x38] sm:$0xf]
        %v272 = vld [vmem:[#allocation5 + $0x3c] sm:$0xf]
        %v273 = vld [vmem:[#allocation5 + $0x40] sm:$0xf]
        %v274 = vld [vmem:[#allocation5 + $0x44] sm:$0xf]
        %v275 = vld [vmem:[#allocation5 + $0x48] sm:$0xf]
        %v276 = vld [vmem:[#allocation5 + $0x4c] sm:$0xf]
        %v277 = vld [vmem:[#allocation5 + $0x50] sm:$0xf]
        %v278 = vld [vmem:[#allocation5 + $0x54] sm:$0xf]
        %v279 = vld [vmem:[#allocation5 + $0x58] sm:$0xf]
        %v280 = vld [vmem:[#allocation5 + $0x5c] sm:$0xf]
        %v281 = vld [vmem:[#allocation5 + $0x60] sm:$0xf]
        %v282 = vld [vmem:[#allocation5 + $0x64] sm:$0xf]
        %v283 = vld [vmem:[#allocation5 + $0x68] sm:$0xf]
        %v284 = vld [vmem:[#allocation5 + $0x6c] sm:$0xf]
        %v285 = vld [vmem:[#allocation5 + $0x70] sm:$0xf]
        %v286 = vld [vmem:[#allocation5 + $0x74] sm:$0xf]
        %v287 = vld [vmem:[#allocation5 + $0x78] sm:$0xf]
        %v288 = vld [vmem:[#allocation5 + $0x7c] sm:$0xf]
        %v289 = vld [vmem:[#allocation5 + $0x80] sm:$0xf]
        %v290 = vld [vmem:[#allocation5 + $0x84] sm:$0xf]
        %v291 = vld [vmem:[#allocation5 + $0x88] sm:$0xf]
        %v292 = vld [vmem:[#allocation5 + $0x8c] sm:$0xf]
        %v293 = vld [vmem:[#allocation5 + $0x90] sm:$0xf]
        %v294 = vld [vmem:[#allocation5 + $0x94] sm:$0xf]
        %v295 = vld [vmem:[#allocation5 + $0x98] sm:$0xf]
        %v296 = vld [vmem:[#allocation5 + $0x9c] sm:$0xf]
        %v297 = vld [vmem:[#allocation5 + $0xa0] sm:$0xf]
        %v298 = vld [vmem:[#allocation5 + $0xa4] sm:$0xf]
        %v299 = vld [vmem:[#allocation5 + $0xa8] sm:$0xf]
        %v300 = vld [vmem:[#allocation5 + $0xac] sm:$0xf]
        %v301 = vld [vmem:[#allocation5 + $0xb0] sm:$0xf]
        %v302 = vld [vmem:[#allocation5 + $0xb4] sm:$0xf]
        %v303 = vld [vmem:[#allocation5 + $0xb8] sm:$0xf]
        %v304 = vld [vmem:[#allocation5 + $0xbc] sm:$0xf]
        %v305 = vld [vmem:[#allocation5 + $0xc0] sm:$0xf]
        %v306 = vld [vmem:[#allocation5 + $0xc4] sm:$0xf]
        %v307 = vld [vmem:[#allocation5 + $0xc8] sm:$0xf]
        %v308 = vld [vmem:[#allocation5 + $0xcc] sm:$0xf]
        %v309 = vld [vmem:[#allocation5 + $0xd0] sm:$0xf]
        %v310 = vld [vmem:[#allocation5 + $0xd4] sm:$0xf]
        %v311 = vld [vmem:[#allocation5 + $0xd8] sm:$0xf]
        %v312 = vld [vmem:[#allocation5 + $0xdc] sm:$0xf]
        %v313 = vld [vmem:[#allocation5 + $0xe0] sm:$0xf]
        %v314 = vld [vmem:[#allocation5 + $0xe4] sm:$0xf]
        %v315 = vld [vmem:[#allocation5 + $0xe8] sm:$0xf]
        %v316 = vld [vmem:[#allocation5 + $0xec] sm:$0xf]
        %v317 = vld [vmem:[#allocation5 + $0xf0] sm:$0xf]
        %v318 = vld [vmem:[#allocation5 + $0xf4] sm:$0xf]
        %v319 = vld [vmem:[#allocation5 + $0xf8] sm:$0xf]
        %v320 = vld [vmem:[#allocation5 + $0xfc] sm:$0xf]
        %v321 = vld [vmem:[#allocation5 + $0x100] sm:$0xf]
        %v322 = vld [vmem:[#allocation5 + $0x104] sm:$0xf]
        %v323 = vld [vmem:[#allocation5 + $0x108] sm:$0xf]
        %v324 = vld [vmem:[#allocation5 + $0x10c] sm:$0xf]
        %v325 = vld [vmem:[#allocation5 + $0x110] sm:$0xf]
        %v326 = vld [vmem:[#allocation5 + $0x114] sm:$0xf]
        %v327 = vld [vmem:[#allocation5 + $0x118] sm:$0xf]
        %v328 = vld [vmem:[#allocation5 + $0x11c] sm:$0xf]
        %v329 = vld [vmem:[#allocation5 + $0x120] sm:$0xf]
        %v330 = vld [vmem:[#allocation5 + $0x124] sm:$0xf]
        %v331 = vld [vmem:[#allocation5 + $0x128] sm:$0xf]
        %v332 = vld [vmem:[#allocation5 + $0x12c] sm:$0xf]
        %v333 = vld [vmem:[#allocation5 + $0x130] sm:$0xf]
        %v334 = vld [vmem:[#allocation5 + $0x134] sm:$0xf]
        %v335 = vld [vmem:[#allocation5 + $0x138] sm:$0xf]
        %v336 = vld [vmem:[#allocation5 + $0x13c] sm:$0xf]
        %v337 = vld [vmem:[#allocation5 + $0x140] sm:$0xf]
        %v338 = vld [vmem:[#allocation5 + $0x144] sm:$0xf]
        %v339 = vld [vmem:[#allocation5 + $0x148] sm:$0xf]
        %v340 = vld [vmem:[#allocation5 + $0x14c] sm:$0xf]
        %v341 = vld [vmem:[#allocation5 + $0x150] sm:$0xf]
        %v342 = vld [vmem:[#allocation5 + $0x154] sm:$0xf]
        %v343 = vld [vmem:[#allocation5 + $0x158] sm:$0xf]
        %v344 = vld [vmem:[#allocation5 + $0x15c] sm:$0xf]
        %v345 = vld [vmem:[#allocation5 + $0x160] sm:$0xf]
        %v346 = vld [vmem:[#allocation5 + $0x164] sm:$0xf]
        %v347 = vld [vmem:[#allocation5 + $0x168] sm:$0xf]
        %v348 = vld [vmem:[#allocation5 + $0x16c] sm:$0xf]
        %v349 = vld [vmem:[#allocation5 + $0x170] sm:$0xf]
        %v350 = vld [vmem:[#allocation5 + $0x174] sm:$0xf]
        %v351 = vld [vmem:[#allocation5 + $0x178] sm:$0xf]
        %v352 = vld [vmem:[#allocation5 + $0x17c] sm:$0xf]
        %v353 = vld [vmem:[#allocation5 + $0x180] sm:$0xf]
        %v354 = vld [vmem:[#allocation5 + $0x184] sm:$0xf]
        %v355 = vld [vmem:[#allocation5 + $0x188] sm:$0xf]
        %v356 = vld [vmem:[#allocation5 + $0x18c] sm:$0xf]
        %v357 = vld [vmem:[#allocation5 + $0x190] sm:$0xf]
        %v358 = vld [vmem:[#allocation5 + $0x194] sm:$0xf]
        %v359 = vld [vmem:[#allocation5 + $0x198] sm:$0xf]
        %v360 = vld [vmem:[#allocation5 + $0x19c] sm:$0xf]
        %v361 = vld [vmem:[#allocation5 + $0x1a0] sm:$0xf]
        %v362 = vld [vmem:[#allocation5 + $0x1a4] sm:$0xf]
        %v363 = vld [vmem:[#allocation5 + $0x1a8] sm:$0xf]
        %v364 = vld [vmem:[#allocation5 + $0x1ac] sm:$0xf]
        %v365 = vld [vmem:[#allocation5 + $0x1b0] sm:$0xf]
        %v366 = vld [vmem:[#allocation5 + $0x1b4] sm:$0xf]
        %v367 = vld [vmem:[#allocation5 + $0x1b8] sm:$0xf]
        %v368 = vld [vmem:[#allocation5 + $0x1bc] sm:$0xf]
        %v369 = vld [vmem:[#allocation5 + $0x1c0] sm:$0xf]
        %v370 = vld [vmem:[#allocation5 + $0x1c4] sm:$0xf]
        %v371 = vld [vmem:[#allocation5 + $0x1c8] sm:$0xf]
        %v372 = vld [vmem:[#allocation5 + $0x1cc] sm:$0xf]
        %v373 = vld [vmem:[#allocation5 + $0x1d0] sm:$0xf]
        %v374 = vld [vmem:[#allocation5 + $0x1d4] sm:$0xf]
        %v375 = vld [vmem:[#allocation5 + $0x1d8] sm:$0xf]
        %v376 = vld [vmem:[#allocation5 + $0x1dc] sm:$0xf]
        %v377 = vld [vmem:[#allocation5 + $0x1e0] sm:$0xf]
        %v378 = vld [vmem:[#allocation5 + $0x1e4] sm:$0xf]
        %v379 = vld [vmem:[#allocation5 + $0x1e8] sm:$0xf]
        %v380 = vld [vmem:[#allocation5 + $0x1ec] sm:$0xf]
        %v381 = vld [vmem:[#allocation5 + $0x1f0] sm:$0xf]
        %v382 = vld [vmem:[#allocation5 + $0x1f4] sm:$0xf]
        %v383 = vld [vmem:[#allocation5 + $0x1f8] sm:$0xf]
        %v384 = vld [vmem:[#allocation5 + $0x1fc] sm:$0xf]
        %v385 = vld [vmem:[%s240] sm:$0x1]
        %v387 = vperm.slane %v385, 0
        %v517 = vunpack.c.l.b16 %v257
        %v518 = vunpack.c.l.b16 %v258
        %v519 = vunpack.c.l.b16 %v259
        %v520 = vunpack.c.l.b16 %v260
        %v521 = vunpack.c.l.b16 %v261
        %v522 = vunpack.c.l.b16 %v262
        %v523 = vunpack.c.l.b16 %v263
        %v524 = vunpack.c.l.b16 %v264
        %v525 = vunpack.c.l.b16 %v265
        %v526 = vunpack.c.l.b16 %v266
        %v527 = vunpack.c.l.b16 %v267
        %v528 = vunpack.c.l.b16 %v268
        %v529 = vunpack.c.l.b16 %v269
        %v530 = vunpack.c.l.b16 %v270
        %v531 = vunpack.c.l.b16 %v271
        %v532 = vunpack.c.l.b16 %v272
        %v533 = vunpack.c.l.b16 %v273
        %v534 = vunpack.c.l.b16 %v274
        %v535 = vunpack.c.l.b16 %v275
        %v536 = vunpack.c.l.b16 %v276
        %v537 = vunpack.c.l.b16 %v277
        %v538 = vunpack.c.l.b16 %v278
        %v539 = vunpack.c.l.b16 %v279
        %v540 = vunpack.c.l.b16 %v280
        %v541 = vunpack.c.l.b16 %v281
        %v542 = vunpack.c.l.b16 %v282
        %v543 = vunpack.c.l.b16 %v283
        %v544 = vunpack.c.l.b16 %v284
        %v545 = vunpack.c.l.b16 %v285
        %v546 = vunpack.c.l.b16 %v286
        %v547 = vunpack.c.l.b16 %v287
        %v548 = vunpack.c.l.b16 %v288
        %v549 = vunpack.c.l.b16 %v289
        %v550 = vunpack.c.l.b16 %v290
        %v551 = vunpack.c.l.b16 %v291
        %v552 = vunpack.c.l.b16 %v292
        %v553 = vunpack.c.l.b16 %v293
        %v554 = vunpack.c.l.b16 %v294
        %v555 = vunpack.c.l.b16 %v295
        %v556 = vunpack.c.l.b16 %v296
        %v557 = vunpack.c.l.b16 %v297
        %v558 = vunpack.c.l.b16 %v298
        %v559 = vunpack.c.l.b16 %v299
        %v560 = vunpack.c.l.b16 %v300
        %v561 = vunpack.c.l.b16 %v301
        %v562 = vunpack.c.l.b16 %v302
        %v563 = vunpack.c.l.b16 %v303
        %v564 = vunpack.c.l.b16 %v304
        %v565 = vunpack.c.l.b16 %v305
        %v566 = vunpack.c.l.b16 %v306
        %v567 = vunpack.c.l.b16 %v307
        %v568 = vunpack.c.l.b16 %v308
        %v569 = vunpack.c.l.b16 %v309
        %v570 = vunpack.c.l.b16 %v310
        %v571 = vunpack.c.l.b16 %v311
        %v572 = vunpack.c.l.b16 %v312
        %v573 = vunpack.c.l.b16 %v313
        %v574 = vunpack.c.l.b16 %v314
        %v575 = vunpack.c.l.b16 %v315
        %v576 = vunpack.c.l.b16 %v316
        %v577 = vunpack.c.l.b16 %v317
        %v578 = vunpack.c.l.b16 %v318
        %v579 = vunpack.c.l.b16 %v319
        %v580 = vunpack.c.l.b16 %v320
        %v581 = vunpack.c.l.b16 %v321
        %v582 = vunpack.c.l.b16 %v322
        %v583 = vunpack.c.l.b16 %v323
        %v584 = vunpack.c.l.b16 %v324
        %v585 = vunpack.c.l.b16 %v325
        %v586 = vunpack.c.l.b16 %v326
        %v587 = vunpack.c.l.b16 %v327
        %v588 = vunpack.c.l.b16 %v328
        %v589 = vunpack.c.l.b16 %v329
        %v590 = vunpack.c.l.b16 %v330
        %v591 = vunpack.c.l.b16 %v331
        %v592 = vunpack.c.l.b16 %v332
        %v593 = vunpack.c.l.b16 %v333
        %v594 = vunpack.c.l.b16 %v334
        %v595 = vunpack.c.l.b16 %v335
        %v596 = vunpack.c.l.b16 %v336
        %v597 = vunpack.c.l.b16 %v337
        %v598 = vunpack.c.l.b16 %v338
        %v599 = vunpack.c.l.b16 %v339
        %v600 = vunpack.c.l.b16 %v340
        %v601 = vunpack.c.l.b16 %v341
        %v602 = vunpack.c.l.b16 %v342
        %v603 = vunpack.c.l.b16 %v343
        %v604 = vunpack.c.l.b16 %v344
        %v605 = vunpack.c.l.b16 %v345
        %v606 = vunpack.c.l.b16 %v346
        %v607 = vunpack.c.l.b16 %v347
        %v608 = vunpack.c.l.b16 %v348
        %v609 = vunpack.c.l.b16 %v349
        %v610 = vunpack.c.l.b16 %v350
        %v611 = vunpack.c.l.b16 %v351
        %v612 = vunpack.c.l.b16 %v352
        %v613 = vunpack.c.l.b16 %v353
        %v614 = vunpack.c.l.b16 %v354
        %v615 = vunpack.c.l.b16 %v355
        %v616 = vunpack.c.l.b16 %v356
        %v617 = vunpack.c.l.b16 %v357
        %v618 = vunpack.c.l.b16 %v358
        %v619 = vunpack.c.l.b16 %v359
        %v620 = vunpack.c.l.b16 %v360
        %v621 = vunpack.c.l.b16 %v361
        %v622 = vunpack.c.l.b16 %v362
        %v623 = vunpack.c.l.b16 %v363
        %v624 = vunpack.c.l.b16 %v364
        %v625 = vunpack.c.l.b16 %v365
        %v626 = vunpack.c.l.b16 %v366
        %v627 = vunpack.c.l.b16 %v367
        %v628 = vunpack.c.l.b16 %v368
        %v629 = vunpack.c.l.b16 %v369
        %v630 = vunpack.c.l.b16 %v370
        %v631 = vunpack.c.l.b16 %v371
        %v632 = vunpack.c.l.b16 %v372
        %v633 = vunpack.c.l.b16 %v373
        %v634 = vunpack.c.l.b16 %v374
        %v635 = vunpack.c.l.b16 %v375
        %v636 = vunpack.c.l.b16 %v376
        %v637 = vunpack.c.l.b16 %v377
        %v638 = vunpack.c.l.b16 %v378
        %v639 = vunpack.c.l.b16 %v379
        %v640 = vunpack.c.l.b16 %v380
        %v641 = vunpack.c.l.b16 %v381
        %v642 = vunpack.c.l.b16 %v382
        %v643 = vunpack.c.l.b16 %v383
        %v644 = vunpack.c.l.b16 %v384
        %v645 = vpack.c.b16 %v518, %v517
        %v646 = vpack.c.b16 %v520, %v519
        %v647 = vpack.c.b16 %v522, %v521
        %v648 = vpack.c.b16 %v524, %v523
        %v649 = vpack.c.b16 %v526, %v525
        %v650 = vpack.c.b16 %v528, %v527
        %v651 = vpack.c.b16 %v530, %v529
        %v652 = vpack.c.b16 %v532, %v531
        %v653 = vpack.c.b16 %v534, %v533
        %v654 = vpack.c.b16 %v536, %v535
        %v655 = vpack.c.b16 %v538, %v537
        %v656 = vpack.c.b16 %v540, %v539
        %v657 = vpack.c.b16 %v542, %v541
        %v658 = vpack.c.b16 %v544, %v543
        %v659 = vpack.c.b16 %v546, %v545
        %v660 = vpack.c.b16 %v548, %v547
        %v661 = vpack.c.b16 %v550, %v549
        %v662 = vpack.c.b16 %v552, %v551
        %v663 = vpack.c.b16 %v554, %v553
        %v664 = vpack.c.b16 %v556, %v555
        %v665 = vpack.c.b16 %v558, %v557
        %v666 = vpack.c.b16 %v560, %v559
        %v667 = vpack.c.b16 %v562, %v561
        %v668 = vpack.c.b16 %v564, %v563
        %v669 = vpack.c.b16 %v566, %v565
        %v670 = vpack.c.b16 %v568, %v567
        %v671 = vpack.c.b16 %v570, %v569
        %v672 = vpack.c.b16 %v572, %v571
        %v673 = vpack.c.b16 %v574, %v573
        %v674 = vpack.c.b16 %v576, %v575
        %v675 = vpack.c.b16 %v578, %v577
        %v676 = vpack.c.b16 %v580, %v579
        %v677 = vpack.c.b16 %v582, %v581
        %v678 = vpack.c.b16 %v584, %v583
        %v679 = vpack.c.b16 %v586, %v585
        %v680 = vpack.c.b16 %v588, %v587
        %v681 = vpack.c.b16 %v590, %v589
        %v682 = vpack.c.b16 %v592, %v591
        %v683 = vpack.c.b16 %v594, %v593
        %v684 = vpack.c.b16 %v596, %v595
        %v685 = vpack.c.b16 %v598, %v597
        %v686 = vpack.c.b16 %v600, %v599
        %v687 = vpack.c.b16 %v602, %v601
        %v688 = vpack.c.b16 %v604, %v603
        %v689 = vpack.c.b16 %v606, %v605
        %v690 = vpack.c.b16 %v608, %v607
        %v691 = vpack.c.b16 %v610, %v609
        %v692 = vpack.c.b16 %v612, %v611
        %v693 = vpack.c.b16 %v614, %v613
        %v694 = vpack.c.b16 %v616, %v615
        %v695 = vpack.c.b16 %v618, %v617
        %v696 = vpack.c.b16 %v620, %v619
        %v697 = vpack.c.b16 %v622, %v621
        %v698 = vpack.c.b16 %v624, %v623
        %v699 = vpack.c.b16 %v626, %v625
        %v700 = vpack.c.b16 %v628, %v627
        %v701 = vpack.c.b16 %v630, %v629
        %v702 = vpack.c.b16 %v632, %v631
        %v703 = vpack.c.b16 %v634, %v633
        %v704 = vpack.c.b16 %v636, %v635
        %v705 = vpack.c.b16 %v638, %v637
        %v706 = vpack.c.b16 %v640, %v639
        %v707 = vpack.c.b16 %v642, %v641
        %v708 = vpack.c.b16 %v644, %v643
        %773 = vmatpush.bf16.msra.mxu0 %v652
        %774 = vmatpush.bf16.msra.mxu0 %v651
        %775 = vmatpush.bf16.msra.mxu0 %v650
        %776 = vmatpush.bf16.msra.mxu0 %v649
        %777 = vmatpush.bf16.msra.mxu0 %v648
        %778 = vmatpush.bf16.msra.mxu0 %v647
        %779 = vmatpush.bf16.msra.mxu0 %v646
        %780 = vmatpush.bf16.msra.mxu0 %v645
        %781 = vmatmul.bf16.gmra.mxu0 %v249
        %v782 = vpop.f32.mrf.mxu0
        %v783 = vadd.f32 %v387, %v782
        %v784 = vpop.f32.mrf.mxu0
        %785 = vdwg.mxu0
        %786 = vmatpush.bf16.msra.mxu0 %v660
        %787 = vmatpush.bf16.msra.mxu0 %v659
        %788 = vmatpush.bf16.msra.mxu0 %v658
        %789 = vmatpush.bf16.msra.mxu0 %v657
        %790 = vmatpush.bf16.msra.mxu0 %v656
        %791 = vmatpush.bf16.msra.mxu0 %v655
        %792 = vmatpush.bf16.msra.mxu0 %v654
        %793 = vmatpush.bf16.msra.mxu0 %v653
        %794 = vmatmul.bf16.gmra.mxu0 %v250
        %v795 = vpop.f32.mrf.mxu0
        %v796 = vadd.f32 %v783, %v795
        %v797 = vpop.f32.mrf.mxu0
        %798 = vdwg.mxu0
        %799 = vmatpush.bf16.msra.mxu0 %v668
        %800 = vmatpush.bf16.msra.mxu0 %v667
        %801 = vmatpush.bf16.msra.mxu0 %v666
        %802 = vmatpush.bf16.msra.mxu0 %v665
        %803 = vmatpush.bf16.msra.mxu0 %v664
        %804 = vmatpush.bf16.msra.mxu0 %v663
        %805 = vmatpush.bf16.msra.mxu0 %v662
        %806 = vmatpush.bf16.msra.mxu0 %v661
        %807 = vmatmul.bf16.gmra.mxu0 %v251
        %v808 = vpop.f32.mrf.mxu0
        %v809 = vadd.f32 %v796, %v808
        %v810 = vpop.f32.mrf.mxu0
        %811 = vdwg.mxu0
        %812 = vmatpush.bf16.msra.mxu0 %v676
        %813 = vmatpush.bf16.msra.mxu0 %v675
        %814 = vmatpush.bf16.msra.mxu0 %v674
        %815 = vmatpush.bf16.msra.mxu0 %v673
        %816 = vmatpush.bf16.msra.mxu0 %v672
        %817 = vmatpush.bf16.msra.mxu0 %v671
        %818 = vmatpush.bf16.msra.mxu0 %v670
        %819 = vmatpush.bf16.msra.mxu0 %v669
        %820 = vmatmul.bf16.gmra.mxu0 %v252
        %v821 = vpop.f32.mrf.mxu0
        %v822 = vadd.f32 %v809, %v821
        %v823 = vpop.f32.mrf.mxu0
        %824 = vdwg.mxu0
        %825 = vmatpush.bf16.msra.mxu0 %v684
        %826 = vmatpush.bf16.msra.mxu0 %v683
        %827 = vmatpush.bf16.msra.mxu0 %v682
        %828 = vmatpush.bf16.msra.mxu0 %v681
        %829 = vmatpush.bf16.msra.mxu0 %v680
        %830 = vmatpush.bf16.msra.mxu0 %v679
        %831 = vmatpush.bf16.msra.mxu0 %v678
        %832 = vmatpush.bf16.msra.mxu0 %v677
        %833 = vmatmul.bf16.gmra.mxu0 %v253
        %v834 = vpop.f32.mrf.mxu0
        %v835 = vadd.f32 %v822, %v834
        %v836 = vpop.f32.mrf.mxu0
        %837 = vdwg.mxu0
        %838 = vmatpush.bf16.msra.mxu0 %v692
        %839 = vmatpush.bf16.msra.mxu0 %v691
        %840 = vmatpush.bf16.msra.mxu0 %v690
        %841 = vmatpush.bf16.msra.mxu0 %v689
        %842 = vmatpush.bf16.msra.mxu0 %v688
        %843 = vmatpush.bf16.msra.mxu0 %v687
        %844 = vmatpush.bf16.msra.mxu0 %v686
        %845 = vmatpush.bf16.msra.mxu0 %v685
        %846 = vmatmul.bf16.gmra.mxu0 %v254
        %v847 = vpop.f32.mrf.mxu0
        %v848 = vadd.f32 %v835, %v847
        %v849 = vpop.f32.mrf.mxu0
        %850 = vdwg.mxu0
        %851 = vmatpush.bf16.msra.mxu0 %v700
        %852 = vmatpush.bf16.msra.mxu0 %v699
        %853 = vmatpush.bf16.msra.mxu0 %v698
        %854 = vmatpush.bf16.msra.mxu0 %v697
        %855 = vmatpush.bf16.msra.mxu0 %v696
        %856 = vmatpush.bf16.msra.mxu0 %v695
        %857 = vmatpush.bf16.msra.mxu0 %v694
        %858 = vmatpush.bf16.msra.mxu0 %v693
        %859 = vmatmul.bf16.gmra.mxu0 %v255
        %v860 = vpop.f32.mrf.mxu0
        %v861 = vadd.f32 %v848, %v860
        %v862 = vpop.f32.mrf.mxu0
        %863 = vdwg.mxu0
        %864 = vmatpush.bf16.msra.mxu0 %v708
        %865 = vmatpush.bf16.msra.mxu0 %v707
        %866 = vmatpush.bf16.msra.mxu0 %v706
        %867 = vmatpush.bf16.msra.mxu0 %v705
        %868 = vmatpush.bf16.msra.mxu0 %v704
        %869 = vmatpush.bf16.msra.mxu0 %v703
        %870 = vmatpush.bf16.msra.mxu0 %v702
        %871 = vmatpush.bf16.msra.mxu0 %v701
        %872 = vmatmul.bf16.gmra.mxu0 %v256
        %v873 = vpop.f32.mrf.mxu0
        %v874 = vadd.f32 %v861, %v873
        %v875 = vpop.f32.mrf.mxu0
        %876 = vdwg.mxu0
        %877 = vst [vmem:[%s237] sm:$0xff] %v874
        %s878 = sand.u32 %s121, 1
        %s879 = scalar_lea.sflag [#allocation4], %s878
        %s880 = sand.u32 %s121, 1
        %s881 = smul.addr %s880, 8
        %s882 = scalar_lea.vmem [#allocation7], %s881
        // Predicated region
        $region41: #{ctc_linear.1} parent=31 // pred_check
          %p883 = pneg %p131
        $region42: #{ctc_linear.1} parent=31 // pred_check_branch
          %885 = sbr.rel (%p883) target = $region44
        $region43: #{ctc_linear.1} parent=31 // pred_region
          %887 = vsyncadd %s879, 0
          %s888 = sadd.s32 %s26, %s25
          %s889 = smul.addr %s888, 8
          %s890 = scalar_lea.hbm %s3, %s889
          %s892 = sshll.u32 %s882, 4
          %s893 = int_to_ptr.vmem [resolvable:$true] %s892
          %s894 = sshll.u32 %s890, 4
          %s895 = int_to_ptr.hbm [resolvable:$true] %s894
          %897 = dma.vmem_to_hbm [thread:$0]  %s893, 128, %s895, %s879
        $region44: #{ctc_linear.1} parent=31 // pred_fallthru
          _
      $region32: #{ctc_linear.1} parent=5 // pred_fallthru
        _
      %p898 = scmp.le.s32.totalorder 2, %s16
      // Predicated region
      $region45: #{ctc_linear.1} parent=5 // pred_check
        %p899 = pneg %p898
      $region46: #{ctc_linear.1} parent=5 // pred_check_branch
        %901 = sbr.rel (%p899) target = $region48
      $region47: #{ctc_linear.1} parent=5 // pred_region
        %s902 = ssub.s32 %s16, 2
        // Predicated region
        $region49: #{ctc_linear.1} parent=47 // pred_check
          %p903 = pneg %p137
        $region50: #{ctc_linear.1} parent=47 // pred_check_branch
          %905 = sbr.rel (%p903) target = $region52
        $region51: #{ctc_linear.1} parent=47 // pred_region
          %s906 = sand.u32 %s122, 1
          %s907 = scalar_lea.sflag [#allocation4], %s906
          %s908 = sand.u32 %s122, 1
          %s909 = smul.addr %s908, 8
          %s910 = scalar_lea.vmem [#allocation7], %s909
          %912 = dma.done %s907, 128
        $region52: #{ctc_linear.1} parent=47 // pred_fallthru
          _
      $region48: #{ctc_linear.1} parent=5 // pred_fallthru
        _
    $region6: #{ctc_linear.1} parent=1 // loop_footer
      %s20 = sadd.s32 1, %s16
    $region7: #{ctc_linear.1} parent=1 // loop_footer_branch
      %15 = sbr.rel target = $region3
    $region8: #{ctc_linear.1} parent=1 // loop_exit
      _
    %913 = vsyncpa [#allocation3], 1
    %s914 = scalar_lea.sflag [#allocation3], 1
    %915 = vsyncpa %s914, 1
    %916 = vsyncpa [#allocation6], 1
    %917 = vsyncpa [#allocation4], 1
    %s918 = scalar_lea.sflag [#allocation4], 1
    %919 = vsyncpa %s918, 1

</llo_original>
